<compile_context>
chip_gen: v5e
topology: v5e:2x2
jax: 0.10.0
libtpu: 0.0.40
codegen_flags: <defaults>
</compile_context>

<pallas_src>
from functools import partial

import jax
import jax.numpy as jnp
from jax.experimental import pallas as pl
from jax.experimental.pallas import tpu as pltpu


def _double_ds_kernel(x_ref, wdw1_ref, wbig1_ref, b1_ref,
                      wdw2_ref, wbig2_ref, b2_ref,
                      o_ref, pad1_ref, pad2_ref, *, Cin, Cout):
    """Fused (depthwise3x3 -> pointwise1x1 -> folded BN -> ReLU) x 2.

    Lane-dense layout: lane index = w*C + c.
      x_ref    : (1, H, W*Cin)            one image per grid step (grid over N)
      wdwX_ref : (9, W*C)       f32       depthwise taps (row = kh*3+kw), tiled over W
      wbigX_ref: (W*C, W*Cout)  bf16      block-diagonal pointwise (BN scale folded)
      bX_ref   : (1, W*Cout)    f32       folded bias (dw bias + pw bias + BN shift)
      o_ref    : (1, H, W*Cout)           W*Cout == 128 here -> unmasked lane-dense stores
      pad1_ref : (H+2, (W+2)*Cin) scratch row+col halo for block 1 (72 lanes, 1 tile)
      pad2_ref : (H+2, W*Cout)    scratch row-only halo for block 2 (128 lanes)
    """
    H = x_ref.shape[1]
    WC1 = x_ref.shape[2]                      # W * Cin
    WC2 = o_ref.shape[2]                      # W * Cout
    PW1 = pad1_ref.shape[1]                   # (W + 2) * Cin

    # ------------------ block 1: dw3x3 -> pw1x1 (+BN) -> ReLU ----------------
    # Zero ONLY the halo border (2 rows + 2 thin lane columns), then store the
    # activation into the interior -- no full-buffer zero fill.
    pad1_ref[0:1, :] = jnp.zeros((1, PW1), jnp.float32)
    pad1_ref[H + 1:H + 2, :] = jnp.zeros((1, PW1), jnp.float32)
    pad1_ref[:, 0:Cin] = jnp.zeros((H + 2, Cin), jnp.float32)
    pad1_ref[:, PW1 - Cin:PW1] = jnp.zeros((H + 2, Cin), jnp.float32)
    pad1_ref[1:H + 1, Cin:Cin + WC1] = x_ref[0]

    w1 = wdw1_ref[...]                                        # (9, W*Cin), loaded once
    # 3 kw-shifted slabs over the full H+2 rows, hoisted out of the kh loop.
    s = [pad1_ref[:, kw * Cin:kw * Cin + WC1] for kw in range(3)]
    t = [s[0] * w1[3 * kh + 0] + s[1] * w1[3 * kh + 1] + s[2] * w1[3 * kh + 2]
         for kh in range(3)]
    acc1 = t[0][0:H] + t[1][1:H + 1] + t[2][2:H + 2]          # (H, W*Cin) f32

    # pointwise 1x1 (+ folded BN scale) as ONE MXU matmul: bf16 in, f32 acc.
    y1 = jnp.maximum(
        jnp.dot(acc1.astype(wbig1_ref.dtype), wbig1_ref[...],
                preferred_element_type=jnp.float32) + b1_ref[...], 0.0)

    # ------------------ block 2 ----------------------------------------------
    # Only a 2-row H halo; the width halo is built with pltpu.roll + boundary
    # masks on the 128-lane activation (no 144-lane, tile-straddling scratch).
    pad2_ref[0:1, :] = jnp.zeros((1, WC2), jnp.float32)
    pad2_ref[H + 1:H + 2, :] = jnp.zeros((1, WC2), jnp.float32)
    pad2_ref[1:H + 1, :] = y1
    p2 = pad2_ref[...]                                        # (H+2, W*Cout)

    lane = jax.lax.broadcasted_iota(jnp.int32, (H + 2, WC2), 1)
    xm = jnp.where(lane >= Cout, pltpu.roll(p2, Cout, axis=1), 0.0)            # w-1
    xp = jnp.where(lane < WC2 - Cout, pltpu.roll(p2, WC2 - Cout, axis=1), 0.0)  # w+1

    w2 = wdw2_ref[...]                                        # (9, W*Cout), loaded once
    t2 = [xm * w2[3 * kh + 0] + p2 * w2[3 * kh + 1] + xp * w2[3 * kh + 2]
          for kh in range(3)]
    acc2 = t2[0][0:H] + t2[1][1:H + 1] + t2[2][2:H + 2]       # (H, W*Cout) f32

    o_ref[0] = jnp.maximum(
        jnp.dot(acc2.astype(wbig2_ref.dtype), wbig2_ref[...],
                preferred_element_type=jnp.float32) + b2_ref[...], 0.0)


def fold_block_params(p, W, eps=1e-5, mxu_dtype=jnp.bfloat16):
    """Fold one DS-conv + BN(eval) block into kernel-ready, lane-dense weights.

    Returns (wdw_tiled (9, W*Cin) f32, wpw_blockdiag (W*Cin, W*Cout) bf16,
             bias_tiled (1, W*Cout) f32).  Constant folding, done once at prep.
    """
    w_dw, b_dw, w_pw, b_pw = p["w_dw"], p["b_dw"], p["w_pw"], p["b_pw"]
    cin, cout = w_pw.shape
    scale = p["gamma"] / jnp.sqrt(p["r_var"] + eps)            # BN (eval) affine
    shift = p["beta"] - p["r_mean"] * scale
    wpw_eff = w_pw * scale[None, :]                            # fold BN scale
    bias_eff = scale * (b_dw @ w_pw + b_pw) + shift            # fold all biases
    wdw_tiled = jnp.tile(w_dw.reshape(9, cin), (1, W)).astype(jnp.float32)
    wpw_blockdiag = jnp.kron(jnp.eye(W, dtype=jnp.float32), wpw_eff).astype(mxu_dtype)
    bias_tiled = jnp.tile(bias_eff, W).reshape(1, W * cout).astype(jnp.float32)
    return wdw_tiled, wpw_blockdiag, bias_tiled


def double_ds_conv_lane_dense(x_lane, prep1, prep2, *, cin, cout):
    """Fused DoubleDSConv on lane-dense (N, H, W*Cin) activations (preferred API)."""
    N, H, WCin = x_lane.shape
    W = WCin // cin
    WCout = W * cout
    wdw1, wbig1, b1 = prep1
    wdw2, wbig2, b2 = prep2

    flops = 2 * N * H * W * (9 * cin + cin * cout + 9 * cout + cout * cout)
    bytes_accessed = int(
        x_lane.size * x_lane.dtype.itemsize + N * H * WCout * 4
        + sum(int(a.size) * a.dtype.itemsize for a in (*prep1, *prep2)))

    return pl.pallas_call(
        partial(_double_ds_kernel, Cin=cin, Cout=cout),
        out_shape=jax.ShapeDtypeStruct((N, H, WCout), jnp.float32),
        grid_spec=pltpu.PrefetchScalarGridSpec(
            num_scalar_prefetch=0,
            grid=(N,),                    # real batch axis -> both v7x TCs busy
            in_specs=[
                pl.BlockSpec((1, H, WCin), lambda n: (n, 0, 0)),
                pl.BlockSpec((9, WCin), lambda n: (0, 0)),
                pl.BlockSpec((WCin, WCout), lambda n: (0, 0)),
                pl.BlockSpec((1, WCout), lambda n: (0, 0)),
                pl.BlockSpec((9, WCout), lambda n: (0, 0)),
                pl.BlockSpec((WCout, WCout), lambda n: (0, 0)),
                pl.BlockSpec((1, WCout), lambda n: (0, 0)),
            ],
            out_specs=pl.BlockSpec((1, H, WCout), lambda n: (n, 0, 0)),
            scratch_shapes=[
                pltpu.VMEM((H + 2, (W + 2) * cin), jnp.float32),   # block-1 halo
                pltpu.VMEM((H + 2, WCout), jnp.float32),           # block-2 row halo
            ],
        ),
        compiler_params=pltpu.CompilerParams(
            dimension_semantics=("parallel",)),
        cost_estimate=pl.CostEstimate(
            flops=int(flops), transcendentals=0, bytes_accessed=bytes_accessed),
    )(x_lane, wdw1, wbig1, b1, wdw2, wbig2, b2)


def nchw_to_lane(x_nchw):
    N, C, H, W = x_nchw.shape
    return jnp.transpose(x_nchw, (0, 2, 3, 1)).reshape(N, H, W * C)


def lane_to_nchw(x_lane, C):
    N, H, WC = x_lane.shape
    return jnp.transpose(x_lane.reshape(N, H, WC // C, C), (0, 3, 1, 2))


def double_ds_conv(x_nchw, prep1, prep2, *, cin, cout):
    """NCHW adapter matching the PyTorch module interface.

    When chaining layers, keep activations lane-dense and call
    double_ds_conv_lane_dense directly: at this problem size the two layout
    transposes below are the dominant extra HBM traffic.
    """
    y = double_ds_conv_lane_dense(nchw_to_lane(x_nchw), prep1, prep2,
                                  cin=cin, cout=cout)
    return lane_to_nchw(y, cout)


def init_raw_params(key, c_in, c_out):
    """Deterministic raw params for one DS-conv + BN block (eval-mode BN)."""
    ks = jax.random.split(key, 8)
    return dict(
        w_dw=jax.random.normal(ks[0], (3, 3, c_in), jnp.float32) * 0.2,
        b_dw=jax.random.normal(ks[1], (c_in,), jnp.float32) * 0.1,
        w_pw=jax.random.normal(ks[2], (c_in, c_out), jnp.float32) * 0.2,
        b_pw=jax.random.normal(ks[3], (c_out,), jnp.float32) * 0.1,
        gamma=1.0 + 0.1 * jax.random.normal(ks[4], (c_out,), jnp.float32),
        beta=0.1 * jax.random.normal(ks[5], (c_out,), jnp.float32),
        r_mean=0.1 * jax.random.normal(ks[6], (c_out,), jnp.float32),
        r_var=1.0 + 0.1 * jax.random.uniform(ks[7], (c_out,), jnp.float32),
    )


def _ds_block_ref(x, p, eps=1e-5):
    """Pure-JAX reference for one DS-conv + BN(eval) + ReLU block (NHWC)."""
    cin = x.shape[-1]
    dw = jax.lax.conv_general_dilated(
        x, p["w_dw"][:, :, None, :], (1, 1), ((1, 1), (1, 1)),
        dimension_numbers=("NHWC", "HWIO", "NHWC"),
        feature_group_count=cin)
    dw = dw + p["b_dw"][None, None, None, :]
    pw = jnp.einsum("nhwc,co->nhwo", dw, p["w_pw"]) + p["b_pw"][None, None, None, :]
    scale = p["gamma"] / jnp.sqrt(p["r_var"] + eps)
    shift = p["beta"] - p["r_mean"] * scale
    return jnp.maximum(pw * scale + shift, 0.0)


if __name__ == "__main__":
    key = jax.random.PRNGKey(0)
    kx, k1, k2 = jax.random.split(key, 3)

    N, Cin, Cout, H, W = 2, 4, 8, 16, 16
    x_nchw = jax.random.normal(kx, (N, Cin, H, W), jnp.float32)

    raw1 = init_raw_params(k1, Cin, Cout)
    raw2 = init_raw_params(k2, Cout, Cout)
    prep1 = fold_block_params(raw1, W)       # weight folding done once (prep time)
    prep2 = fold_block_params(raw2, W)

    out = double_ds_conv(x_nchw, prep1, prep2, cin=Cin, cout=Cout)
    out = jax.block_until_ready(out)

    # cross-check against a plain-JAX (unfolded) reference
    x_nhwc = jnp.transpose(x_nchw, (0, 2, 3, 1))
    r = _ds_block_ref(x_nhwc, raw1)
    r = _ds_block_ref(r, raw2)
    ref = jnp.transpose(r, (0, 3, 1, 2))

    assert out.shape == (N, Cout, H, W)
    # tolerance covers bf16 MXU operands (f32 accumulate) + accumulation-order
    # differences vs the XLA reference conv
    assert jnp.allclose(out, ref, atol=3e-2, rtol=3e-2), "mismatch vs reference"
    print("KERNEL_OK")
</pallas_src>

<mosaic_0001>
module attributes {stable_mosaic.version = 11 : i64} {
  func.func @_double_ds_kernel(%arg0: i32, %arg1: memref<1x16x64xf32, #tpu.memory_space<vmem>>, %arg2: memref<9x64xf32, #tpu.memory_space<vmem>>, %arg3: memref<64x128xbf16, #tpu.memory_space<vmem>>, %arg4: memref<1x128xf32, #tpu.memory_space<vmem>>, %arg5: memref<9x128xf32, #tpu.memory_space<vmem>>, %arg6: memref<128x128xbf16, #tpu.memory_space<vmem>>, %arg7: memref<1x128xf32, #tpu.memory_space<vmem>>, %arg8: memref<1x16x128xf32, #tpu.memory_space<vmem>>, %arg9: memref<18x72xf32, #tpu.memory_space<vmem>>, %arg10: memref<18x128xf32, #tpu.memory_space<vmem>>) attributes {dimension_semantics = [#tpu.dimension_semantics<parallel>], iteration_bounds = array<i64: 2>, scalar_prefetch = 0 : i64, scratch_operands = 2 : i64, tpu.core_type = #tpu.core_type<tc>, window_params = [{transform_indices = @transform_0, window_bounds = array<i64: 1, 16, 64>}, {pipeline_mode = #tpu.pipeline_mode<synchronous>, transform_indices = @transform_1, window_bounds = array<i64: 9, 64>}, {pipeline_mode = #tpu.pipeline_mode<synchronous>, transform_indices = @transform_2, window_bounds = array<i64: 64, 128>}, {pipeline_mode = #tpu.pipeline_mode<synchronous>, transform_indices = @transform_3, window_bounds = array<i64: 1, 128>}, {pipeline_mode = #tpu.pipeline_mode<synchronous>, transform_indices = @transform_4, window_bounds = array<i64: 9, 128>}, {pipeline_mode = #tpu.pipeline_mode<synchronous>, transform_indices = @transform_5, window_bounds = array<i64: 128, 128>}, {pipeline_mode = #tpu.pipeline_mode<synchronous>, transform_indices = @transform_6, window_bounds = array<i64: 1, 128>}, {transform_indices = @transform_7, window_bounds = array<i64: 1, 16, 128>}]} {
    %cst = arith.constant 0.000000e+00 : f32
    %0 = vector.broadcast %cst : f32 to vector<1x72xf32>
    %c0 = arith.constant 0 : index
    %c0_0 = arith.constant 0 : index
    %1 = vector.load %arg9[%c0, %c0_0] : memref<18x72xf32, #tpu.memory_space<vmem>>, vector<1x72xf32>
    tpu.vector_store %arg9[%c0, %c0_0], %0 {strides = array<i32>} : memref<18x72xf32, #tpu.memory_space<vmem>>, vector<1x72xf32>,
    %cst_1 = arith.constant 0.000000e+00 : f32
    %2 = vector.broadcast %cst_1 : f32 to vector<1x72xf32>
    %c17 = arith.constant 17 : index
    %c0_2 = arith.constant 0 : index
    %3 = vector.load %arg9[%c17, %c0_2] : memref<18x72xf32, #tpu.memory_space<vmem>>, vector<1x72xf32>
    tpu.vector_store %arg9[%c17, %c0_2], %2 {strides = array<i32>} : memref<18x72xf32, #tpu.memory_space<vmem>>, vector<1x72xf32>,
    %cst_3 = arith.constant 0.000000e+00 : f32
    %4 = vector.broadcast %cst_3 : f32 to vector<18x4xf32>
    %c0_4 = arith.constant 0 : index
    %c0_5 = arith.constant 0 : index
    %5 = vector.load %arg9[%c0_4, %c0_5] : memref<18x72xf32, #tpu.memory_space<vmem>>, vector<18x4xf32>
    tpu.vector_store %arg9[%c0_4, %c0_5], %4 {strides = array<i32>} : memref<18x72xf32, #tpu.memory_space<vmem>>, vector<18x4xf32>,
    %cst_6 = arith.constant 0.000000e+00 : f32
    %6 = vector.broadcast %cst_6 : f32 to vector<18x4xf32>
    %c0_7 = arith.constant 0 : index
    %c68 = arith.constant 68 : index
    %7 = vector.load %arg9[%c0_7, %c68] : memref<18x72xf32, #tpu.memory_space<vmem>>, vector<18x4xf32>
    tpu.vector_store %arg9[%c0_7, %c68], %6 {strides = array<i32>} : memref<18x72xf32, #tpu.memory_space<vmem>>, vector<18x4xf32>,
    %c0_8 = arith.constant 0 : index
    %c0_9 = arith.constant 0 : index
    %c0_10 = arith.constant 0 : index
    %8 = vector.load %arg1[%c0_8, %c0_9, %c0_10] : memref<1x16x64xf32, #tpu.memory_space<vmem>>, vector<1x16x64xf32>
    %9 = vector.shape_cast %8 : vector<1x16x64xf32> to vector<16x64xf32>
    %c1 = arith.constant 1 : index
    %c4 = arith.constant 4 : index
    %10 = vector.load %arg9[%c1, %c4] : memref<18x72xf32, #tpu.memory_space<vmem>>, vector<16x64xf32>
    tpu.vector_store %arg9[%c1, %c4], %9 {strides = array<i32>} : memref<18x72xf32, #tpu.memory_space<vmem>>, vector<16x64xf32>,
    %c0_11 = arith.constant 0 : index
    %c0_12 = arith.constant 0 : index
    %11 = vector.load %arg2[%c0_11, %c0_12] : memref<9x64xf32, #tpu.memory_space<vmem>>, vector<9x64xf32>
    %c0_13 = arith.constant 0 : index
    %c0_14 = arith.constant 0 : index
    %12 = vector.load %arg9[%c0_13, %c0_14] : memref<18x72xf32, #tpu.memory_space<vmem>>, vector<18x64xf32>
    %c0_15 = arith.constant 0 : index
    %c4_16 = arith.constant 4 : index
    %13 = vector.load %arg9[%c0_15, %c4_16] : memref<18x72xf32, #tpu.memory_space<vmem>>, vector<18x64xf32>
    %c0_17 = arith.constant 0 : index
    %c8 = arith.constant 8 : index
    %14 = vector.load %arg9[%c0_17, %c8] : memref<18x72xf32, #tpu.memory_space<vmem>>, vector<18x64xf32>
    %15 = vector.extract_strided_slice %11 {offsets = [0, 0], sizes = [1, 64], strides = [1, 1]} : vector<9x64xf32> to vector<1x64xf32>
    %16 = vector.shape_cast %15 : vector<1x64xf32> to vector<64xf32>
    %17 = vector.shape_cast %16 : vector<64xf32> to vector<1x64xf32>
    %18 = vector.broadcast %17 : vector<1x64xf32> to vector<18x64xf32>
    %19 = arith.mulf %12, %18 : vector<18x64xf32>
    %20 = vector.extract_strided_slice %11 {offsets = [1, 0], sizes = [1, 64], strides = [1, 1]} : vector<9x64xf32> to vector<1x64xf32>
    %21 = vector.shape_cast %20 : vector<1x64xf32> to vector<64xf32>
    %22 = vector.shape_cast %21 : vector<64xf32> to vector<1x64xf32>
    %23 = vector.broadcast %22 : vector<1x64xf32> to vector<18x64xf32>
    %24 = arith.mulf %13, %23 : vector<18x64xf32>
    %25 = arith.addf %19, %24 : vector<18x64xf32>
    %26 = vector.extract_strided_slice %11 {offsets = [2, 0], sizes = [1, 64], strides = [1, 1]} : vector<9x64xf32> to vector<1x64xf32>
    %27 = vector.shape_cast %26 : vector<1x64xf32> to vector<64xf32>
    %28 = vector.shape_cast %27 : vector<64xf32> to vector<1x64xf32>
    %29 = vector.broadcast %28 : vector<1x64xf32> to vector<18x64xf32>
    %30 = arith.mulf %14, %29 : vector<18x64xf32>
    %31 = arith.addf %25, %30 : vector<18x64xf32>
    %32 = vector.extract_strided_slice %11 {offsets = [3, 0], sizes = [1, 64], strides = [1, 1]} : vector<9x64xf32> to vector<1x64xf32>
    %33 = vector.shape_cast %32 : vector<1x64xf32> to vector<64xf32>
    %34 = vector.shape_cast %33 : vector<64xf32> to vector<1x64xf32>
    %35 = vector.broadcast %34 : vector<1x64xf32> to vector<18x64xf32>
    %36 = arith.mulf %12, %35 : vector<18x64xf32>
    %37 = vector.extract_strided_slice %11 {offsets = [4, 0], sizes = [1, 64], strides = [1, 1]} : vector<9x64xf32> to vector<1x64xf32>
    %38 = vector.shape_cast %37 : vector<1x64xf32> to vector<64xf32>
    %39 = vector.shape_cast %38 : vector<64xf32> to vector<1x64xf32>
    %40 = vector.broadcast %39 : vector<1x64xf32> to vector<18x64xf32>
    %41 = arith.mulf %13, %40 : vector<18x64xf32>
    %42 = arith.addf %36, %41 : vector<18x64xf32>
    %43 = vector.extract_strided_slice %11 {offsets = [5, 0], sizes = [1, 64], strides = [1, 1]} : vector<9x64xf32> to vector<1x64xf32>
    %44 = vector.shape_cast %43 : vector<1x64xf32> to vector<64xf32>
    %45 = vector.shape_cast %44 : vector<64xf32> to vector<1x64xf32>
    %46 = vector.broadcast %45 : vector<1x64xf32> to vector<18x64xf32>
    %47 = arith.mulf %14, %46 : vector<18x64xf32>
    %48 = arith.addf %42, %47 : vector<18x64xf32>
    %49 = vector.extract_strided_slice %11 {offsets = [6, 0], sizes = [1, 64], strides = [1, 1]} : vector<9x64xf32> to vector<1x64xf32>
    %50 = vector.shape_cast %49 : vector<1x64xf32> to vector<64xf32>
    %51 = vector.shape_cast %50 : vector<64xf32> to vector<1x64xf32>
    %52 = vector.broadcast %51 : vector<1x64xf32> to vector<18x64xf32>
    %53 = arith.mulf %12, %52 : vector<18x64xf32>
    %54 = vector.extract_strided_slice %11 {offsets = [7, 0], sizes = [1, 64], strides = [1, 1]} : vector<9x64xf32> to vector<1x64xf32>
    %55 = vector.shape_cast %54 : vector<1x64xf32> to vector<64xf32>
    %56 = vector.shape_cast %55 : vector<64xf32> to vector<1x64xf32>
    %57 = vector.broadcast %56 : vector<1x64xf32> to vector<18x64xf32>
    %58 = arith.mulf %13, %57 : vector<18x64xf32>
    %59 = arith.addf %53, %58 : vector<18x64xf32>
    %60 = vector.extract_strided_slice %11 {offsets = [8, 0], sizes = [1, 64], strides = [1, 1]} : vector<9x64xf32> to vector<1x64xf32>
    %61 = vector.shape_cast %60 : vector<1x64xf32> to vector<64xf32>
    %62 = vector.shape_cast %61 : vector<64xf32> to vector<1x64xf32>
    %63 = vector.broadcast %62 : vector<1x64xf32> to vector<18x64xf32>
    %64 = arith.mulf %14, %63 : vector<18x64xf32>
    %65 = arith.addf %59, %64 : vector<18x64xf32>
    %66 = vector.extract_strided_slice %31 {offsets = [0, 0], sizes = [16, 64], strides = [1, 1]} : vector<18x64xf32> to vector<16x64xf32>
    %67 = vector.extract_strided_slice %48 {offsets = [1, 0], sizes = [16, 64], strides = [1, 1]} : vector<18x64xf32> to vector<16x64xf32>
    %68 = arith.addf %66, %67 : vector<16x64xf32>
    %69 = vector.extract_strided_slice %65 {offsets = [2, 0], sizes = [16, 64], strides = [1, 1]} : vector<18x64xf32> to vector<16x64xf32>
    %70 = arith.addf %68, %69 : vector<16x64xf32>
    %71 = arith.truncf %70 : vector<16x64xf32> to vector<16x64xbf16>
    %c0_18 = arith.constant 0 : index
    %c0_19 = arith.constant 0 : index
    %72 = vector.load %arg3[%c0_18, %c0_19] : memref<64x128xbf16, #tpu.memory_space<vmem>>, vector<64x128xbf16>
    %cst_20 = arith.constant dense<0.000000e+00> : vector<16x128xf32>
    %73 = tpu.matmul %71, %72, %cst_20 {dimension_numbers = #tpu.dot_dimension_numbers<[1], [0], [0], [1], [0, 0, 1, 1], [], []>} : vector<16x64xbf16>, vector<64x128xbf16>, vector<16x128xf32> -> vector<16x128xf32>
    %c0_21 = arith.constant 0 : index
    %c0_22 = arith.constant 0 : index
    %74 = vector.load %arg4[%c0_21, %c0_22] : memref<1x128xf32, #tpu.memory_space<vmem>>, vector<1x128xf32>
    %75 = vector.broadcast %74 : vector<1x128xf32> to vector<16x128xf32>
    %76 = arith.addf %73, %75 : vector<16x128xf32>
    %cst_23 = arith.constant 0.000000e+00 : f32
    %77 = vector.broadcast %cst_23 : f32 to vector<16x128xf32>
    %78 = arith.maximumf %76, %77 : vector<16x128xf32>
    %cst_24 = arith.constant 0.000000e+00 : f32
    %79 = vector.broadcast %cst_24 : f32 to vector<1x128xf32>
    %c0_25 = arith.constant 0 : index
    %c0_26 = arith.constant 0 : index
    %80 = vector.load %arg10[%c0_25, %c0_26] : memref<18x128xf32, #tpu.memory_space<vmem>>, vector<1x128xf32>
    tpu.vector_store %arg10[%c0_25, %c0_26], %79 {strides = array<i32>} : memref<18x128xf32, #tpu.memory_space<vmem>>, vector<1x128xf32>,
    %cst_27 = arith.constant 0.000000e+00 : f32
    %81 = vector.broadcast %cst_27 : f32 to vector<1x128xf32>
    %c17_28 = arith.constant 17 : index
    %c0_29 = arith.constant 0 : index
    %82 = vector.load %arg10[%c17_28, %c0_29] : memref<18x128xf32, #tpu.memory_space<vmem>>, vector<1x128xf32>
    tpu.vector_store %arg10[%c17_28, %c0_29], %81 {strides = array<i32>} : memref<18x128xf32, #tpu.memory_space<vmem>>, vector<1x128xf32>,
    %c1_30 = arith.constant 1 : index
    %c0_31 = arith.constant 0 : index
    %83 = vector.load %arg10[%c1_30, %c0_31] : memref<18x128xf32, #tpu.memory_space<vmem>>, vector<16x128xf32>
    tpu.vector_store %arg10[%c1_30, %c0_31], %78 {strides = array<i32>} : memref<18x128xf32, #tpu.memory_space<vmem>>, vector<16x128xf32>,
    %c0_32 = arith.constant 0 : index
    %c0_33 = arith.constant 0 : index
    %84 = vector.load %arg10[%c0_32, %c0_33] : memref<18x128xf32, #tpu.memory_space<vmem>>, vector<18x128xf32>
    %85 = tpu.iota {dimensions = array<i32: 1>} : vector<18x128xi32>
    %c8_i32 = arith.constant 8 : i32
    %86 = vector.broadcast %c8_i32 : i32 to vector<18x128xi32>
    %87 = arith.cmpi sge, %85, %86 : vector<18x128xi32>
    %c8_i32_34 = arith.constant 8 : i32
    %88 = tpu.dynamic_rotate %84 by %c8_i32_34 dim 1 : vector<18x128xf32>, i32 -> vector<18x128xf32>
    %cst_35 = arith.constant 0.000000e+00 : f32
    %89 = vector.broadcast %cst_35 : f32 to vector<18x128xf32>
    %90 = arith.select %87, %88, %89 : vector<18x128xi1>, vector<18x128xf32>
    %c120_i32 = arith.constant 120 : i32
    %91 = vector.broadcast %c120_i32 : i32 to vector<18x128xi32>
    %92 = arith.cmpi slt, %85, %91 : vector<18x128xi32>
    %c120_i32_36 = arith.constant 120 : i32
    %93 = tpu.dynamic_rotate %84 by %c120_i32_36 dim 1 : vector<18x128xf32>, i32 -> vector<18x128xf32>
    %cst_37 = arith.constant 0.000000e+00 : f32
    %94 = vector.broadcast %cst_37 : f32 to vector<18x128xf32>
    %95 = arith.select %92, %93, %94 : vector<18x128xi1>, vector<18x128xf32>
    %c0_38 = arith.constant 0 : index
    %c0_39 = arith.constant 0 : index
    %96 = vector.load %arg5[%c0_38, %c0_39] : memref<9x128xf32, #tpu.memory_space<vmem>>, vector<9x128xf32>
    %97 = vector.extract_strided_slice %96 {offsets = [0, 0], sizes = [1, 128], strides = [1, 1]} : vector<9x128xf32> to vector<1x128xf32>
    %98 = vector.shape_cast %97 : vector<1x128xf32> to vector<128xf32>
    %99 = vector.shape_cast %98 : vector<128xf32> to vector<1x128xf32>
    %100 = vector.broadcast %99 : vector<1x128xf32> to vector<18x128xf32>
    %101 = arith.mulf %90, %100 : vector<18x128xf32>
    %102 = vector.extract_strided_slice %96 {offsets = [1, 0], sizes = [1, 128], strides = [1, 1]} : vector<9x128xf32> to vector<1x128xf32>
    %103 = vector.shape_cast %102 : vector<1x128xf32> to vector<128xf32>
    %104 = vector.shape_cast %103 : vector<128xf32> to vector<1x128xf32>
    %105 = vector.broadcast %104 : vector<1x128xf32> to vector<18x128xf32>
    %106 = arith.mulf %84, %105 : vector<18x128xf32>
    %107 = arith.addf %101, %106 : vector<18x128xf32>
    %108 = vector.extract_strided_slice %96 {offsets = [2, 0], sizes = [1, 128], strides = [1, 1]} : vector<9x128xf32> to vector<1x128xf32>
    %109 = vector.shape_cast %108 : vector<1x128xf32> to vector<128xf32>
    %110 = vector.shape_cast %109 : vector<128xf32> to vector<1x128xf32>
    %111 = vector.broadcast %110 : vector<1x128xf32> to vector<18x128xf32>
    %112 = arith.mulf %95, %111 : vector<18x128xf32>
    %113 = arith.addf %107, %112 : vector<18x128xf32>
    %114 = vector.extract_strided_slice %96 {offsets = [3, 0], sizes = [1, 128], strides = [1, 1]} : vector<9x128xf32> to vector<1x128xf32>
    %115 = vector.shape_cast %114 : vector<1x128xf32> to vector<128xf32>
    %116 = vector.shape_cast %115 : vector<128xf32> to vector<1x128xf32>
    %117 = vector.broadcast %116 : vector<1x128xf32> to vector<18x128xf32>
    %118 = arith.mulf %90, %117 : vector<18x128xf32>
    %119 = vector.extract_strided_slice %96 {offsets = [4, 0], sizes = [1, 128], strides = [1, 1]} : vector<9x128xf32> to vector<1x128xf32>
    %120 = vector.shape_cast %119 : vector<1x128xf32> to vector<128xf32>
    %121 = vector.shape_cast %120 : vector<128xf32> to vector<1x128xf32>
    %122 = vector.broadcast %121 : vector<1x128xf32> to vector<18x128xf32>
    %123 = arith.mulf %84, %122 : vector<18x128xf32>
    %124 = arith.addf %118, %123 : vector<18x128xf32>
    %125 = vector.extract_strided_slice %96 {offsets = [5, 0], sizes = [1, 128], strides = [1, 1]} : vector<9x128xf32> to vector<1x128xf32>
    %126 = vector.shape_cast %125 : vector<1x128xf32> to vector<128xf32>
    %127 = vector.shape_cast %126 : vector<128xf32> to vector<1x128xf32>
    %128 = vector.broadcast %127 : vector<1x128xf32> to vector<18x128xf32>
    %129 = arith.mulf %95, %128 : vector<18x128xf32>
    %130 = arith.addf %124, %129 : vector<18x128xf32>
    %131 = vector.extract_strided_slice %96 {offsets = [6, 0], sizes = [1, 128], strides = [1, 1]} : vector<9x128xf32> to vector<1x128xf32>
    %132 = vector.shape_cast %131 : vector<1x128xf32> to vector<128xf32>
    %133 = vector.shape_cast %132 : vector<128xf32> to vector<1x128xf32>
    %134 = vector.broadcast %133 : vector<1x128xf32> to vector<18x128xf32>
    %135 = arith.mulf %90, %134 : vector<18x128xf32>
    %136 = vector.extract_strided_slice %96 {offsets = [7, 0], sizes = [1, 128], strides = [1, 1]} : vector<9x128xf32> to vector<1x128xf32>
    %137 = vector.shape_cast %136 : vector<1x128xf32> to vector<128xf32>
    %138 = vector.shape_cast %137 : vector<128xf32> to vector<1x128xf32>
    %139 = vector.broadcast %138 : vector<1x128xf32> to vector<18x128xf32>
    %140 = arith.mulf %84, %139 : vector<18x128xf32>
    %141 = arith.addf %135, %140 : vector<18x128xf32>
    %142 = vector.extract_strided_slice %96 {offsets = [8, 0], sizes = [1, 128], strides = [1, 1]} : vector<9x128xf32> to vector<1x128xf32>
    %143 = vector.shape_cast %142 : vector<1x128xf32> to vector<128xf32>
    %144 = vector.shape_cast %143 : vector<128xf32> to vector<1x128xf32>
    %145 = vector.broadcast %144 : vector<1x128xf32> to vector<18x128xf32>
    %146 = arith.mulf %95, %145 : vector<18x128xf32>
    %147 = arith.addf %141, %146 : vector<18x128xf32>
    %148 = vector.extract_strided_slice %113 {offsets = [0, 0], sizes = [16, 128], strides = [1, 1]} : vector<18x128xf32> to vector<16x128xf32>
    %149 = vector.extract_strided_slice %130 {offsets = [1, 0], sizes = [16, 128], strides = [1, 1]} : vector<18x128xf32> to vector<16x128xf32>
    %150 = arith.addf %148, %149 : vector<16x128xf32>
    %151 = vector.extract_strided_slice %147 {offsets = [2, 0], sizes = [16, 128], strides = [1, 1]} : vector<18x128xf32> to vector<16x128xf32>
    %152 = arith.addf %150, %151 : vector<16x128xf32>
    %153 = arith.truncf %152 : vector<16x128xf32> to vector<16x128xbf16>
    %c0_40 = arith.constant 0 : index
    %c0_41 = arith.constant 0 : index
    %154 = vector.load %arg6[%c0_40, %c0_41] : memref<128x128xbf16, #tpu.memory_space<vmem>>, vector<128x128xbf16>
    %cst_42 = arith.constant dense<0.000000e+00> : vector<16x128xf32>
    %155 = tpu.matmul %153, %154, %cst_42 {dimension_numbers = #tpu.dot_dimension_numbers<[1], [0], [0], [1], [0, 0, 1, 1], [], []>} : vector<16x128xbf16>, vector<128x128xbf16>, vector<16x128xf32> -> vector<16x128xf32>
    %c0_43 = arith.constant 0 : index
    %c0_44 = arith.constant 0 : index
    %156 = vector.load %arg7[%c0_43, %c0_44] : memref<1x128xf32, #tpu.memory_space<vmem>>, vector<1x128xf32>
    %157 = vector.broadcast %156 : vector<1x128xf32> to vector<16x128xf32>
    %158 = arith.addf %155, %157 : vector<16x128xf32>
    %cst_45 = arith.constant 0.000000e+00 : f32
    %159 = vector.broadcast %cst_45 : f32 to vector<16x128xf32>
    %160 = arith.maximumf %158, %159 : vector<16x128xf32>
    %c0_46 = arith.constant 0 : index
    %c0_47 = arith.constant 0 : index
    %c0_48 = arith.constant 0 : index
    %161 = vector.load %arg8[%c0_46, %c0_47, %c0_48] : memref<1x16x128xf32, #tpu.memory_space<vmem>>, vector<1x16x128xf32>
    %162 = vector.shape_cast %161 : vector<1x16x128xf32> to vector<16x128xf32>
    %163 = vector.shape_cast %160 : vector<16x128xf32> to vector<1x16x128xf32>
    tpu.vector_store %arg8[%c0_46, %c0_47, %c0_48], %163 {strides = array<i32>} : memref<1x16x128xf32, #tpu.memory_space<vmem>>, vector<1x16x128xf32>,
    return
  }
  func.func @transform_0(%arg0: i32) -> (i32, i32, i32) {
    %c0_i32 = arith.constant 0 : i32
    %c0_i32_0 = arith.constant 0 : i32
    %c0_i32_1 = arith.constant 0 : i32
    return %arg0, %c0_i32, %c0_i32_0 : i32, i32, i32
  }
  func.func @transform_1(%arg0: i32) -> (i32, i32) {
    %c0_i32 = arith.constant 0 : i32
    %c0_i32_0 = arith.constant 0 : i32
    %c0_i32_1 = arith.constant 0 : i32
    return %c0_i32, %c0_i32_0 : i32, i32
  }
  func.func @transform_2(%arg0: i32) -> (i32, i32) {
    %c0_i32 = arith.constant 0 : i32
    %c0_i32_0 = arith.constant 0 : i32
    %c0_i32_1 = arith.constant 0 : i32
    return %c0_i32, %c0_i32_0 : i32, i32
  }
  func.func @transform_3(%arg0: i32) -> (i32, i32) {
    %c0_i32 = arith.constant 0 : i32
    %c0_i32_0 = arith.constant 0 : i32
    %c0_i32_1 = arith.constant 0 : i32
    return %c0_i32, %c0_i32_0 : i32, i32
  }
  func.func @transform_4(%arg0: i32) -> (i32, i32) {
    %c0_i32 = arith.constant 0 : i32
    %c0_i32_0 = arith.constant 0 : i32
    %c0_i32_1 = arith.constant 0 : i32
    return %c0_i32, %c0_i32_0 : i32, i32
  }
  func.func @transform_5(%arg0: i32) -> (i32, i32) {
    %c0_i32 = arith.constant 0 : i32
    %c0_i32_0 = arith.constant 0 : i32
    %c0_i32_1 = arith.constant 0 : i32
    return %c0_i32, %c0_i32_0 : i32, i32
  }
  func.func @transform_6(%arg0: i32) -> (i32, i32) {
    %c0_i32 = arith.constant 0 : i32
    %c0_i32_0 = arith.constant 0 : i32
    %c0_i32_1 = arith.constant 0 : i32
    return %c0_i32, %c0_i32_0 : i32, i32
  }
  func.func @transform_7(%arg0: i32) -> (i32, i32, i32) {
    %c0_i32 = arith.constant 0 : i32
    %c0_i32_0 = arith.constant 0 : i32
    %c0_i32_1 = arith.constant 0 : i32
    return %arg0, %c0_i32, %c0_i32_0 : i32, i32, i32
  }
}

</mosaic_0001>

<llo_original>
// kernel: tpu_custom_call.1
$region0: #{tpu_custom_call.1}
  #allocation0 [shape = 'u32[]', space=smem, size = 0x4, offset = 0x4, fixed_abs, tag = 'smem constant byte address 0x4 - core index']
  #allocation1 [shape = 'u32[72,128]{1,0:T(1,128)}', space=vmem, size = 0x9000, scoped, tag = 'internal scratch']
  #allocation2 [shape = 'f32[18,72]{1,0:T(8,128)}', space=vmem, size = 0x3000, scoped, tag = 'scratch operand']
  #allocation3 [shape = 'f32[18,128]{1,0:T(8,128)}', space=vmem, size = 0x3000, scoped, tag = 'scratch operand']
  %s0 = inlined_call_operand.hbm [shape: f32[2,16,64], index: 0, kind: input, shape index: {}]
  %s1 = inlined_call_operand.hbm [shape: f32[9,64], index: 1, kind: input, shape index: {}]
  %s2 = inlined_call_operand.hbm [shape: bf16[64,128], index: 2, kind: input, shape index: {}]
  %s3 = inlined_call_operand.vmem [shape: f32[1,128], index: 3, kind: input, shape index: {}]
  %s4 = inlined_call_operand.hbm [shape: f32[9,128], index: 4, kind: input, shape index: {}]
  %s5 = inlined_call_operand.hbm [shape: bf16[128,128], index: 5, kind: input, shape index: {}]
  %s6 = inlined_call_operand.vmem [shape: f32[1,128], index: 6, kind: input, shape index: {}]
  %s7 = inlined_call_operand.hbm [shape: f32[2,16,128], index: 7, kind: output, shape index: {}]
  %s8 = sld [smem:[#allocation0]]
  $region81: #{tpu_custom_call.1} parent=0
    _
  %s10 = ssub.s32 1, %s8
  %s11 = scalar_select 0, %s10, %s8
  $region1: #{tpu_custom_call.1} parent=0
    #allocation4 [shape = 'u8[16384]{0}', space=vmem, size = 0x4000, scoped, tag = 'input window, operand 0']
    #allocation5 [shape = 's32[2]{0}', space=sflag, size = 0x8, scoped, tag = 'scoped memory for tpu_custom_call.1']
    #allocation6 [shape = 's32[2]{0}', space=sflag, size = 0x8, scoped, tag = 'scoped memory for tpu_custom_call.1']
    #allocation7 [shape = 'u8[8192]{0}', space=vmem, size = 0x2000, scoped, tag = 'input window, operand 1, single buffered']
    #allocation8 [shape = 's32[1]{0}', space=sflag, size = 0x4, scoped, tag = 'scoped memory for tpu_custom_call.1']
    #allocation9 [shape = 'u8[16384]{0}', space=vmem, size = 0x4000, scoped, tag = 'input window, operand 2, single buffered']
    #allocation10 [shape = 'u8[8192]{0}', space=vmem, size = 0x2000, scoped, tag = 'input window, operand 4, single buffered']
    #allocation11 [shape = 's32[1]{0}', space=sflag, size = 0x4, scoped, tag = 'scoped memory for tpu_custom_call.1']
    #allocation12 [shape = 'u8[32768]{0}', space=vmem, size = 0x8000, scoped, tag = 'input window, operand 5, single buffered']
    #allocation13 [shape = 'u8[16384]{0}', space=vmem, size = 0x4000, scoped, tag = 'output window, operand 0']
    %12 = vsyncpa [#allocation5], 0
    %s13 = scalar_lea.sflag [#allocation5], 1
    %14 = vsyncpa %s13, 0
    %15 = vsyncpa [#allocation8], 0
    %16 = vsyncpa [#allocation11], 0
    %17 = vsyncpa [#allocation6], 0
    %s18 = scalar_lea.sflag [#allocation6], 1
    %19 = vsyncpa %s18, 0
    loop: start=0, step=1, limit=4
    $region2: #{tpu_custom_call.1} parent=1 // loop_pre_header
      _
    $region3: #{tpu_custom_call.1} parent=1 // loop_header
      %s21 = sphi 0, %s25
      %p22 = scmp.ge.s32.totalorder %s21, 4
      %s31 = sphi 0, %s33
      %s34 = sphi 0, %s31
      %s35 = sphi 0, %s34
      %s51 = sphi 0, %s35
      %s55 = sphi 0, %s55
      %s57 = sphi 0, %s55
      %s58 = sphi 0, %s57
      %s72 = sphi 0, %s58
      %s76 = sphi 0, %s76
      %s78 = sphi 0, %s76
      %s79 = sphi 0, %s78
      %s93 = sphi 0, %s79
      %s97 = sphi 0, %s97
      %s99 = sphi 0, %s97
      %s100 = sphi 0, %s99
      %s114 = sphi 0, %s100
      %s118 = sphi 0, %s118
      %s120 = sphi 0, %s118
      %s121 = sphi 0, %s120
      %s135 = sphi 0, %s121
      %s139 = sphi 0, %s139
      %s141 = sphi 0, %s139
      %s142 = sphi 0, %s141
      %s156 = sphi 0, %s142
      %s160 = sphi 0, %s160
      %s162 = sphi 0, %s160
      %s163 = sphi 0, %s162
      %s177 = sphi 0, %s163
      %s183 = sphi 0, %s185
      %s186 = sphi 0, %s183
      %s187 = sphi 0, %s186
      %s203 = sphi 0, %s187
    $region4: #{tpu_custom_call.1} parent=1 // loop_header_branch
      %24 = sbr.rel (%p22) target = $region8
    $region5: #{tpu_custom_call.1} parent=1 // loop_body
      %s26 = ssub.s32 %s21, 1
      %s27 = ssub.s32 %s21, 2
      %s28 = sadd.s32 %s21, 1
      %s29 = ssub.s32 %s21, %s28
      %p30 = scmp.eq.s32.totalorder %s29, 0
      %s32 = sadd.s32 %s31, 1
      %s33 = scalar_select %p30, %s31, %s32
      %p36 = pneg %p30
      %p37 = scmp.eq.s32.totalorder %s21, 1
      %p38 = por %p36, %p37
      %p39 = scmp.ne.s32.totalorder %s31, %s34
      %p40 = scmp.eq.s32.totalorder %s21, 0
      %p41 = por %p39, %p40
      %p42 = scmp.ne.s32.totalorder %s31, %s34
      %p43 = scmp.eq.s32.totalorder %s26, 1
      %p44 = por %p42, %p43
      %p45 = scmp.ne.s32.totalorder %s34, %s35
      %p46 = scmp.eq.s32.totalorder %s26, 0
      %p47 = por %p45, %p46
      %p48 = scmp.ne.s32.totalorder %s34, %s35
      %p49 = scmp.eq.s32.totalorder %s27, 1
      %p50 = por %p48, %p49
      %p52 = scmp.ne.s32.totalorder %s35, %s51
      %p53 = scmp.eq.s32.totalorder %s27, 0
      %p54 = por %p52, %p53
      %s56 = sadd.s32 %s55, 1
      %p59 = scmp.eq.s32.totalorder %s21, 1
      %p60 = scmp.ne.s32.totalorder %s55, %s57
      %p61 = scmp.eq.s32.totalorder %s21, 0
      %p62 = por %p60, %p61
      %p63 = scmp.ne.s32.totalorder %s55, %s57
      %p64 = scmp.eq.s32.totalorder %s26, 1
      %p65 = por %p63, %p64
      %p66 = scmp.ne.s32.totalorder %s57, %s58
      %p67 = scmp.eq.s32.totalorder %s26, 0
      %p68 = por %p66, %p67
      %p69 = scmp.ne.s32.totalorder %s57, %s58
      %p70 = scmp.eq.s32.totalorder %s27, 1
      %p71 = por %p69, %p70
      %p73 = scmp.ne.s32.totalorder %s58, %s72
      %p74 = scmp.eq.s32.totalorder %s27, 0
      %p75 = por %p73, %p74
      %s77 = sadd.s32 %s76, 1
      %p80 = scmp.eq.s32.totalorder %s21, 1
      %p81 = scmp.ne.s32.totalorder %s76, %s78
      %p82 = scmp.eq.s32.totalorder %s21, 0
      %p83 = por %p81, %p82
      %p84 = scmp.ne.s32.totalorder %s76, %s78
      %p85 = scmp.eq.s32.totalorder %s26, 1
      %p86 = por %p84, %p85
      %p87 = scmp.ne.s32.totalorder %s78, %s79
      %p88 = scmp.eq.s32.totalorder %s26, 0
      %p89 = por %p87, %p88
      %p90 = scmp.ne.s32.totalorder %s78, %s79
      %p91 = scmp.eq.s32.totalorder %s27, 1
      %p92 = por %p90, %p91
      %p94 = scmp.ne.s32.totalorder %s79, %s93
      %p95 = scmp.eq.s32.totalorder %s27, 0
      %p96 = por %p94, %p95
      %s98 = sadd.s32 %s97, 1
      %p101 = scmp.eq.s32.totalorder %s21, 1
      %p102 = scmp.ne.s32.totalorder %s97, %s99
      %p103 = scmp.eq.s32.totalorder %s21, 0
      %p104 = por %p102, %p103
      %p105 = scmp.ne.s32.totalorder %s97, %s99
      %p106 = scmp.eq.s32.totalorder %s26, 1
      %p107 = por %p105, %p106
      %p108 = scmp.ne.s32.totalorder %s99, %s100
      %p109 = scmp.eq.s32.totalorder %s26, 0
      %p110 = por %p108, %p109
      %p111 = scmp.ne.s32.totalorder %s99, %s100
      %p112 = scmp.eq.s32.totalorder %s27, 1
      %p113 = por %p111, %p112
      %p115 = scmp.ne.s32.totalorder %s100, %s114
      %p116 = scmp.eq.s32.totalorder %s27, 0
      %p117 = por %p115, %p116
      %s119 = sadd.s32 %s118, 1
      %p122 = scmp.eq.s32.totalorder %s21, 1
      %p123 = scmp.ne.s32.totalorder %s118, %s120
      %p124 = scmp.eq.s32.totalorder %s21, 0
      %p125 = por %p123, %p124
      %p126 = scmp.ne.s32.totalorder %s118, %s120
      %p127 = scmp.eq.s32.totalorder %s26, 1
      %p128 = por %p126, %p127
      %p129 = scmp.ne.s32.totalorder %s120, %s121
      %p130 = scmp.eq.s32.totalorder %s26, 0
      %p131 = por %p129, %p130
      %p132 = scmp.ne.s32.totalorder %s120, %s121
      %p133 = scmp.eq.s32.totalorder %s27, 1
      %p134 = por %p132, %p133
      %p136 = scmp.ne.s32.totalorder %s121, %s135
      %p137 = scmp.eq.s32.totalorder %s27, 0
      %p138 = por %p136, %p137
      %s140 = sadd.s32 %s139, 1
      %p143 = scmp.eq.s32.totalorder %s21, 1
      %p144 = scmp.ne.s32.totalorder %s139, %s141
      %p145 = scmp.eq.s32.totalorder %s21, 0
      %p146 = por %p144, %p145
      %p147 = scmp.ne.s32.totalorder %s139, %s141
      %p148 = scmp.eq.s32.totalorder %s26, 1
      %p149 = por %p147, %p148
      %p150 = scmp.ne.s32.totalorder %s141, %s142
      %p151 = scmp.eq.s32.totalorder %s26, 0
      %p152 = por %p150, %p151
      %p153 = scmp.ne.s32.totalorder %s141, %s142
      %p154 = scmp.eq.s32.totalorder %s27, 1
      %p155 = por %p153, %p154
      %p157 = scmp.ne.s32.totalorder %s142, %s156
      %p158 = scmp.eq.s32.totalorder %s27, 0
      %p159 = por %p157, %p158
      %s161 = sadd.s32 %s160, 1
      %p164 = scmp.eq.s32.totalorder %s21, 1
      %p165 = scmp.ne.s32.totalorder %s160, %s162
      %p166 = scmp.eq.s32.totalorder %s21, 0
      %p167 = por %p165, %p166
      %p168 = scmp.ne.s32.totalorder %s160, %s162
      %p169 = scmp.eq.s32.totalorder %s26, 1
      %p170 = por %p168, %p169
      %p171 = scmp.ne.s32.totalorder %s162, %s163
      %p172 = scmp.eq.s32.totalorder %s26, 0
      %p173 = por %p171, %p172
      %p174 = scmp.ne.s32.totalorder %s162, %s163
      %p175 = scmp.eq.s32.totalorder %s27, 1
      %p176 = por %p174, %p175
      %p178 = scmp.ne.s32.totalorder %s163, %s177
      %p179 = scmp.eq.s32.totalorder %s27, 0
      %p180 = por %p178, %p179
      %s181 = ssub.s32 %s21, %s28
      %p182 = scmp.eq.s32.totalorder %s181, 0
      %s184 = sadd.s32 %s183, 1
      %s185 = scalar_select %p182, %s183, %s184
      %p188 = pneg %p182
      %p189 = scmp.eq.s32.totalorder %s21, 1
      %p190 = por %p188, %p189
      %p191 = scmp.ne.s32.totalorder %s183, %s186
      %p192 = scmp.eq.s32.totalorder %s21, 0
      %p193 = por %p191, %p192
      %p194 = scmp.ne.s32.totalorder %s183, %s186
      %p195 = scmp.eq.s32.totalorder %s26, 1
      %p196 = por %p194, %p195
      %p197 = scmp.ne.s32.totalorder %s186, %s187
      %p198 = scmp.eq.s32.totalorder %s26, 0
      %p199 = por %p197, %p198
      %p200 = scmp.ne.s32.totalorder %s186, %s187
      %p201 = scmp.eq.s32.totalorder %s27, 1
      %p202 = por %p200, %p201
      %p204 = scmp.ne.s32.totalorder %s187, %s203
      %p205 = scmp.eq.s32.totalorder %s27, 0
      %p206 = por %p204, %p205
      %p207 = scmp.le.s32.totalorder 1, %s21
      %p208 = scmp.lt.s32.totalorder %s21, 3
      %p209 = pnand %p207, %p208
      %p210 = pneg %p209
      // Predicated region
      $region9: #{tpu_custom_call.1} parent=5 // pred_check
        _
      $region10: #{tpu_custom_call.1} parent=5 // pred_check_branch
        %212 = sbr.rel (%p209) target = $region12
      $region11: #{tpu_custom_call.1} parent=5 // pred_region
        %s213 = ssub.s32 %s21, 1
        // Predicated region
        $region13: #{tpu_custom_call.1} parent=11 // pred_check
          %p214 = pneg %p68
        $region14: #{tpu_custom_call.1} parent=11 // pred_check_branch
          %216 = sbr.rel (%p214) target = $region16
        $region15: #{tpu_custom_call.1} parent=11 // pred_region
          %218 = vsyncadd [#allocation8], 0
          %s219 = sshll.u32 %s1, 4
          %s220 = int_to_ptr.hbm [resolvable:$true] %s219
          %s221 = sshll.u32 [#allocation7], 4
          %s222 = int_to_ptr.vmem [resolvable:$true] %s221
          %227 = dma.hbm_to_vmem [thread:$0]  %s220, 256, %s222, [#allocation8], 128, 128, 8
        $region16: #{tpu_custom_call.1} parent=11 // pred_fallthru
          _
        // Predicated region
        $region17: #{tpu_custom_call.1} parent=11 // pred_check
          %p228 = pneg %p89
        $region18: #{tpu_custom_call.1} parent=11 // pred_check_branch
          %230 = sbr.rel (%p228) target = $region20
        $region19: #{tpu_custom_call.1} parent=11 // pred_region
          %232 = vsyncadd [#allocation8], 0
          %s233 = sshll.u32 %s2, 4
          %s234 = int_to_ptr.hbm [resolvable:$true] %s233
          %s235 = sshll.u32 [#allocation9], 4
          %s236 = int_to_ptr.vmem [resolvable:$true] %s235
          %241 = dma.hbm_to_vmem [thread:$0]  %s234, 512, %s236, [#allocation8], 64, 64, 4
        $region20: #{tpu_custom_call.1} parent=11 // pred_fallthru
          _
        // Predicated region
        $region21: #{tpu_custom_call.1} parent=11 // pred_check
          %p242 = pneg %p110
        $region22: #{tpu_custom_call.1} parent=11 // pred_check_branch
          %244 = sbr.rel (%p242) target = $region24
        $region23: #{tpu_custom_call.1} parent=11 // pred_region
          _
        $region24: #{tpu_custom_call.1} parent=11 // pred_fallthru
          _
        // Predicated region
        $region25: #{tpu_custom_call.1} parent=11 // pred_check
          %p245 = pneg %p131
        $region26: #{tpu_custom_call.1} parent=11 // pred_check_branch
          %247 = sbr.rel (%p245) target = $region28
        $region27: #{tpu_custom_call.1} parent=11 // pred_region
          %249 = vsyncadd [#allocation11], 0
          %s250 = sshll.u32 %s4, 4
          %s251 = int_to_ptr.hbm [resolvable:$true] %s250
          %s252 = sshll.u32 [#allocation10], 4
          %s253 = int_to_ptr.vmem [resolvable:$true] %s252
          %258 = dma.hbm_to_vmem [thread:$0]  %s251, 256, %s253, [#allocation11], 128, 128, 8
        $region28: #{tpu_custom_call.1} parent=11 // pred_fallthru
          _
        // Predicated region
        $region29: #{tpu_custom_call.1} parent=11 // pred_check
          %p259 = pneg %p152
        $region30: #{tpu_custom_call.1} parent=11 // pred_check_branch
          %261 = sbr.rel (%p259) target = $region32
        $region31: #{tpu_custom_call.1} parent=11 // pred_region
          %263 = vsyncadd [#allocation11], 0
          %s264 = sshll.u32 %s5, 4
          %s265 = int_to_ptr.hbm [resolvable:$true] %s264
          %s266 = sshll.u32 [#allocation12], 4
          %s267 = int_to_ptr.vmem [resolvable:$true] %s266
          %272 = dma.hbm_to_vmem [thread:$0]  %s265, 1024, %s267, [#allocation11], 64, 64, 4
        $region32: #{tpu_custom_call.1} parent=11 // pred_fallthru
          _
        // Predicated region
        $region33: #{tpu_custom_call.1} parent=11 // pred_check
          %p273 = pneg %p173
        $region34: #{tpu_custom_call.1} parent=11 // pred_check_branch
          %275 = sbr.rel (%p273) target = $region36
        $region35: #{tpu_custom_call.1} parent=11 // pred_region
          _
        $region36: #{tpu_custom_call.1} parent=11 // pred_fallthru
          _
      $region12: #{tpu_custom_call.1} parent=5 // pred_fallthru
        _
      %p276 = scmp.lt.s32.totalorder %s21, 2
      // Predicated region
      $region37: #{tpu_custom_call.1} parent=5 // pred_check
        %p277 = pneg %p276
      $region38: #{tpu_custom_call.1} parent=5 // pred_check_branch
        %279 = sbr.rel (%p277) target = $region40
      $region39: #{tpu_custom_call.1} parent=5 // pred_region
        // Predicated region
        $region41: #{tpu_custom_call.1} parent=39 // pred_check
          %p280 = pneg %p41
        $region42: #{tpu_custom_call.1} parent=39 // pred_check_branch
          %282 = sbr.rel (%p280) target = $region44
        $region43: #{tpu_custom_call.1} parent=39 // pred_region
          %s283 = sand.u32 %s31, 1
          %s284 = scalar_lea.sflag [#allocation5], %s283
          %s285 = sand.u32 %s31, 1
          %s286 = smul.addr %s285, 16
          %s287 = scalar_lea.vmem [#allocation4], %s286
          %289 = vsyncadd %s284, 0
          %s290 = smul.addr %s21, 2
          %s291 = smul.addr %s290, 8
          %s292 = scalar_lea.hbm %s0, %s291
          %s293 = sshll.u32 %s292, 4
          %s294 = int_to_ptr.hbm [resolvable:$true] %s293
          %s295 = sshll.u32 %s287, 4
          %s296 = int_to_ptr.vmem [resolvable:$true] %s295
          %301 = dma.hbm_to_vmem [thread:$0]  %s294, 256, %s296, %s284, 128, 128, 8
        $region44: #{tpu_custom_call.1} parent=39 // pred_fallthru
          _
      $region40: #{tpu_custom_call.1} parent=5 // pred_fallthru
        _
      %p302 = scmp.le.s32.totalorder 1, %s21
      %p303 = scmp.lt.s32.totalorder %s21, 3
      %p304 = pnand %p302, %p303
      %p305 = pneg %p304
      // Predicated region
      $region45: #{tpu_custom_call.1} parent=5 // pred_check
        _
      $region46: #{tpu_custom_call.1} parent=5 // pred_check_branch
        %307 = sbr.rel (%p304) target = $region48
      $region47: #{tpu_custom_call.1} parent=5 // pred_region
        %s308 = ssub.s32 %s21, 1
        %s309 = sand.u32 %s34, 1
        %s310 = scalar_lea.sflag [#allocation5], %s309
        %s311 = sand.u32 %s34, 1
        %s312 = smul.addr %s311, 16
        %s313 = scalar_lea.vmem [#allocation4], %s312
        // Predicated region
        $region49: #{tpu_custom_call.1} parent=47 // pred_check
          %p314 = pneg %p47
        $region50: #{tpu_custom_call.1} parent=47 // pred_check_branch
          %316 = sbr.rel (%p314) target = $region52
        $region51: #{tpu_custom_call.1} parent=47 // pred_region
          %318 = dma.done %s310, 256
        $region52: #{tpu_custom_call.1} parent=47 // pred_fallthru
          _
        // Predicated region
        $region53: #{tpu_custom_call.1} parent=47 // pred_check
          %p319 = pneg %p68
        $region54: #{tpu_custom_call.1} parent=47 // pred_check_branch
          %321 = sbr.rel (%p319) target = $region56
        $region55: #{tpu_custom_call.1} parent=47 // pred_region
          %323 = dma.done [#allocation8], 256
        $region56: #{tpu_custom_call.1} parent=47 // pred_fallthru
          _
        // Predicated region
        $region57: #{tpu_custom_call.1} parent=47 // pred_check
          %p324 = pneg %p89
        $region58: #{tpu_custom_call.1} parent=47 // pred_check_branch
          %326 = sbr.rel (%p324) target = $region60
        $region59: #{tpu_custom_call.1} parent=47 // pred_region
          %328 = dma.done [#allocation8], 512
        $region60: #{tpu_custom_call.1} parent=47 // pred_fallthru
          _
        // Predicated region
        $region61: #{tpu_custom_call.1} parent=47 // pred_check
          %p329 = pneg %p131
        $region62: #{tpu_custom_call.1} parent=47 // pred_check_branch
          %331 = sbr.rel (%p329) target = $region64
        $region63: #{tpu_custom_call.1} parent=47 // pred_region
          %333 = dma.done [#allocation11], 256
        $region64: #{tpu_custom_call.1} parent=47 // pred_fallthru
          _
        // Predicated region
        $region65: #{tpu_custom_call.1} parent=47 // pred_check
          %p334 = pneg %p152
        $region66: #{tpu_custom_call.1} parent=47 // pred_check_branch
          %336 = sbr.rel (%p334) target = $region68
        $region67: #{tpu_custom_call.1} parent=47 // pred_region
          %338 = dma.done [#allocation11], 1024
        $region68: #{tpu_custom_call.1} parent=47 // pred_fallthru
          _
        %s339 = sand.u32 %s34, 1
        %s340 = scalar_lea.sflag [#allocation5], %s339
        %s341 = sand.u32 %s34, 1
        %s342 = smul.addr %s341, 16
        %s343 = scalar_lea.vmem [#allocation4], %s342
        %p344 = pneg %p47
        %p345 = pneg %p44
        %p346 = pneg %p68
        %p347 = pneg %p65
        %p348 = pneg %p89
        %p349 = pneg %p86
        %p350 = pneg %p110
        %p351 = pneg %p107
        %p352 = pneg %p131
        %p353 = pneg %p128
        %p354 = pneg %p152
        %p355 = pneg %p149
        %p356 = pneg %p173
        %p357 = pneg %p170
        %p358 = pneg %p199
        %p359 = pneg %p196
        %s360 = sand.u32 %s186, 1
        %s361 = scalar_lea.sflag [#allocation6], %s360
        %s362 = sand.u32 %s186, 1
        %s363 = smul.addr %s362, 16
        %s364 = scalar_lea.vmem [#allocation13], %s363
        %vm366 = vcmask 581632
        %367 = vst.msk [vmem:[#allocation2] sm:$0x1] %vm366, 0.0
        %368 = vst.msk [vmem:[#allocation2 + $0x11] sm:$0x1] %vm366, 0.0
        %vm369 = vcmask 31744
        %370 = vst.msk [vmem:[#allocation2] sm:$0xff] %vm369, 0.0
        %371 = vst.msk [vmem:[#allocation2 + $0x8] sm:$0xff] %vm369, 0.0
        %vm372 = vcmask 25600
        %373 = vst.msk [vmem:[#allocation2 + $0x10] sm:$0x3] %vm372, 0.0
        %vm374 = vcmask 589344
        %375 = vst.msk [vmem:[#allocation2] sm:$0xff] %vm374, 0.0
        %376 = vst.msk [vmem:[#allocation2 + $0x8] sm:$0xff] %vm374, 0.0
        %vm377 = vcmask 583200
        %378 = vst.msk [vmem:[#allocation2 + $0x10] sm:$0x3] %vm377, 0.0
        %v379 = vld [vmem:[%s313] sm:$0xff]
        %v380 = vld [vmem:[%s313 + $0x8] sm:$0xff]
        %383 = vrot.lane.b32.xlu0 %v379, 4
        %v384 = vpop.permute.xlu0 %383
        %385 = vrot.lane.b32.xlu0 %v380, 4
        %v386 = vpop.permute.xlu0 %385
        %vm389 = vcmask 556064
        %390 = vst.msk [vmem:[#allocation2 + $0x1] sm:$0xff] %vm389, %v384
        %391 = vst.msk [vmem:[#allocation2 + $0x9] sm:$0xff] %vm389, %v386
        %v392 = vld [vmem:[#allocation7] sm:$0xff]
        %v393 = vld [vmem:[#allocation7 + $0x8] sm:$0x1]
        %v394 = vld [vmem:[#allocation2] sm:$0xff]
        %v395 = vld [vmem:[#allocation2 + $0x8] sm:$0xff]
        %v396 = vld [vmem:[#allocation2 + $0x10] sm:$0x3]
        %v397 = vperm.slane %v392, 0
        %v398 = vmul.f32 %v394, %v397
        %v399 = vmul.f32 %v395, %v397
        %v400 = vperm.slane %v392, 1
        %402 = vrot.lane.b32.xlu0 %v400, 4
        %v403 = vpop.permute.xlu0 %402
        %v405 = vmul.f32 %v394, %v403
        %v406 = vmul.f32 %v395, %v403
        %409 = vrot.lane.b32.xlu0 %v405, 124
        %v410 = vpop.permute.xlu0 %409
        %411 = vrot.lane.b32.xlu0 %v406, 124
        %v412 = vpop.permute.xlu0 %411
        %v415 = vadd.f32 %v398, %v410
        %v416 = vadd.f32 %v399, %v412
        %v417 = vperm.slane %v392, 2
        %419 = vrot.lane.b32.xlu0 %v417, 8
        %v420 = vpop.permute.xlu0 %419
        %v422 = vmul.f32 %v394, %v420
        %v423 = vmul.f32 %v395, %v420
        %426 = vrot.lane.b32.xlu0 %v422, 120
        %v427 = vpop.permute.xlu0 %426
        %428 = vrot.lane.b32.xlu0 %v423, 120
        %v429 = vpop.permute.xlu0 %428
        %v432 = vadd.f32 %v415, %v427
        %v433 = vadd.f32 %v416, %v429
        %v434 = vperm.slane %v392, 3
        %v435 = vmul.f32 %v394, %v434
        %v436 = vmul.f32 %v395, %v434
        %v437 = vmul.f32 %v396, %v434
        %v438 = vperm.slane %v392, 4
        %440 = vrot.lane.b32.xlu0 %v438, 4
        %v441 = vpop.permute.xlu0 %440
        %v443 = vmul.f32 %v394, %v441
        %v444 = vmul.f32 %v395, %v441
        %v445 = vmul.f32 %v396, %v441
        %449 = vrot.lane.b32.xlu0 %v443, 124
        %v450 = vpop.permute.xlu0 %449
        %451 = vrot.lane.b32.xlu0 %v444, 124
        %v452 = vpop.permute.xlu0 %451
        %453 = vrot.lane.b32.xlu0 %v445, 124
        %v454 = vpop.permute.xlu0 %453
        %v458 = vadd.f32 %v435, %v450
        %v459 = vadd.f32 %v436, %v452
        %v460 = vadd.f32 %v437, %v454
        %v461 = vperm.slane %v392, 5
        %463 = vrot.lane.b32.xlu0 %v461, 8
        %v464 = vpop.permute.xlu0 %463
        %v466 = vmul.f32 %v394, %v464
        %v467 = vmul.f32 %v395, %v464
        %v468 = vmul.f32 %v396, %v464
        %472 = vrot.lane.b32.xlu0 %v466, 120
        %v473 = vpop.permute.xlu0 %472
        %474 = vrot.lane.b32.xlu0 %v467, 120
        %v475 = vpop.permute.xlu0 %474
        %476 = vrot.lane.b32.xlu0 %v468, 120
        %v477 = vpop.permute.xlu0 %476
        %v481 = vadd.f32 %v458, %v473
        %v482 = vadd.f32 %v459, %v475
        %v483 = vadd.f32 %v460, %v477
        %v484 = vperm.slane %v392, 6
        %v485 = vmul.f32 %v394, %v484
        %v486 = vmul.f32 %v395, %v484
        %v487 = vmul.f32 %v396, %v484
        %v488 = vperm.slane %v392, 7
        %490 = vrot.lane.b32.xlu0 %v488, 4
        %v491 = vpop.permute.xlu0 %490
        %v493 = vmul.f32 %v394, %v491
        %v494 = vmul.f32 %v395, %v491
        %v495 = vmul.f32 %v396, %v491
        %499 = vrot.lane.b32.xlu0 %v493, 124
        %v500 = vpop.permute.xlu0 %499
        %501 = vrot.lane.b32.xlu0 %v494, 124
        %v502 = vpop.permute.xlu0 %501
        %503 = vrot.lane.b32.xlu0 %v495, 124
        %v504 = vpop.permute.xlu0 %503
        %v508 = vadd.f32 %v485, %v500
        %v509 = vadd.f32 %v486, %v502
        %v510 = vadd.f32 %v487, %v504
        %v511 = vperm.slane %v393, 0
        %513 = vrot.lane.b32.xlu0 %v511, 8
        %v514 = vpop.permute.xlu0 %513
        %v516 = vmul.f32 %v394, %v514
        %v517 = vmul.f32 %v395, %v514
        %v518 = vmul.f32 %v396, %v514
        %522 = vrot.lane.b32.xlu0 %v516, 120
        %v523 = vpop.permute.xlu0 %522
        %524 = vrot.lane.b32.xlu0 %v517, 120
        %v525 = vpop.permute.xlu0 %524
        %526 = vrot.lane.b32.xlu0 %v518, 120
        %v527 = vpop.permute.xlu0 %526
        %v531 = vadd.f32 %v508, %v523
        %v532 = vadd.f32 %v509, %v525
        %v533 = vadd.f32 %v510, %v527
        %vm537 = vcmask 1046528
        %v538 = vrot.slane %v481, 1
        %v539 = vrot.slane %v482, 1
        %v540 = vsel %vm537, %v538, %v539
        %v541 = vrot.slane %v483, 1
        %v542 = vsel %vm537, %v539, %v541
        %v545 = vadd.f32 %v432, %v540
        %v546 = vadd.f32 %v433, %v542
        %vm550 = vcmask 1045504
        %v551 = vrot.slane %v531, 2
        %v552 = vrot.slane %v532, 2
        %v553 = vsel %vm550, %v551, %v552
        %v554 = vrot.slane %v533, 2
        %v555 = vsel %vm550, %v552, %v554
        %v558 = vadd.f32 %v545, %v553
        %v559 = vadd.f32 %v546, %v555
        %v560 = vpack.c.bf16 %v559, %v558
        %v561 = vld [vmem:[#allocation9] sm:$0xf]
        %v562 = vld [vmem:[#allocation9 + $0x4] sm:$0xf]
        %v563 = vld [vmem:[#allocation9 + $0x8] sm:$0xf]
        %v564 = vld [vmem:[#allocation9 + $0xc] sm:$0xf]
        %v565 = vld [vmem:[#allocation9 + $0x10] sm:$0xf]
        %v566 = vld [vmem:[#allocation9 + $0x14] sm:$0xf]
        %v567 = vld [vmem:[#allocation9 + $0x18] sm:$0xf]
        %v568 = vld [vmem:[#allocation9 + $0x1c] sm:$0xf]
        %v569 = vld [vmem:[%s3] sm:$0x1]
        %v571 = vperm.slane %v569, 0
        %v581 = vunpack.c.l.b16 %v561
        %v582 = vunpack.c.l.b16 %v562
        %v583 = vunpack.c.l.b16 %v563
        %v584 = vunpack.c.l.b16 %v564
        %v585 = vunpack.c.l.b16 %v565
        %v586 = vunpack.c.l.b16 %v566
        %v587 = vunpack.c.l.b16 %v567
        %v588 = vunpack.c.l.b16 %v568
        %v589 = vpack.c.b16 %v582, %v581
        %v590 = vpack.c.b16 %v584, %v583
        %v591 = vpack.c.b16 %v586, %v585
        %v592 = vpack.c.b16 %v588, %v587
        %vm597 = vcmask 523264
        %v599 = vsel %vm597, %v560, 0
        %601 = vmatpush.bf16.msra.mxu0 0
        %602 = vmatpush.bf16.msra.mxu0 0
        %603 = vmatpush.bf16.msra.mxu0 0
        %604 = vmatpush.bf16.msra.mxu0 0
        %605 = vmatpush.bf16.msra.mxu0 %v592
        %606 = vmatpush.bf16.msra.mxu0 %v591
        %607 = vmatpush.bf16.msra.mxu0 %v590
        %608 = vmatpush.bf16.msra.mxu0 %v589
        %609 = vmatmul.bf16.gmra.mxu0 %v599
        %v610 = vpop.f32.mrf.mxu0
        %v611 = vadd.f32 %v571, %v610
        %v612 = vpop.f32.mrf.mxu0
        %v613 = vadd.f32 %v571, %v612
        %614 = vdwg.mxu0
        %v615 = vmax.f32 %v611, 0.0
        %v616 = vmax.f32 %v613, 0.0
        %617 = vst [vmem:[#allocation3] sm:$0x1] 0.0
        %618 = vst [vmem:[#allocation3 + $0x11] sm:$0x1] 0.0
        %619 = vst [vmem:[#allocation3 + $0x1] sm:$0xff] %v615
        %620 = vst [vmem:[#allocation3 + $0x9] sm:$0xff] %v616
        %v621 = vld [vmem:[#allocation3] sm:$0xff]
        %v622 = vld [vmem:[#allocation3 + $0x8] sm:$0xff]
        %v623 = vld [vmem:[#allocation3 + $0x10] sm:$0x3]
        %v624 = vlaneseq
        %v625 = vand.u32 %v624, 127
        %vm626 = vcmp.ge.s32.totalorder %v625, 8
        %627 = vrot.lane.b32.xlu0 %v621, 8
        %v628 = vpop.permute.xlu0 %627
        %629 = vrot.lane.b32.xlu0 %v622, 8
        %v630 = vpop.permute.xlu0 %629
        %631 = vrot.lane.b32.xlu0 %v623, 8
        %v632 = vpop.permute.xlu0 %631
        %v633 = vsel %vm626, %v628, 0.0
        %v634 = vsel %vm626, %v630, 0.0
        %v635 = vsel %vm626, %v632, 0.0
        %vm636 = vcmp.lt.s32.totalorder %v625, 120
        %637 = vrot.lane.b32.xlu0 %v621, 120
        %v638 = vpop.permute.xlu0 %637
        %639 = vrot.lane.b32.xlu0 %v622, 120
        %v640 = vpop.permute.xlu0 %639
        %641 = vrot.lane.b32.xlu0 %v623, 120
        %v642 = vpop.permute.xlu0 %641
        %v643 = vsel %vm636, %v638, 0.0
        %v644 = vsel %vm636, %v640, 0.0
        %v645 = vsel %vm636, %v642, 0.0
        %v646 = vld [vmem:[#allocation10] sm:$0xff]
        %v647 = vld [vmem:[#allocation10 + $0x8] sm:$0x1]
        %v648 = vperm.slane %v646, 0
        %v649 = vmul.f32 %v633, %v648
        %v650 = vmul.f32 %v634, %v648
        %v651 = vperm.slane %v646, 1
        %v652 = vmul.f32 %v621, %v651
        %v653 = vmul.f32 %v622, %v651
        %v654 = vadd.f32 %v649, %v652
        %v655 = vadd.f32 %v650, %v653
        %v656 = vperm.slane %v646, 2
        %v657 = vmul.f32 %v643, %v656
        %v658 = vmul.f32 %v644, %v656
        %v659 = vadd.f32 %v654, %v657
        %v660 = vadd.f32 %v655, %v658
        %v661 = vperm.slane %v646, 3
        %v662 = vmul.f32 %v633, %v661
        %v663 = vmul.f32 %v634, %v661
        %v664 = vmul.f32 %v635, %v661
        %v665 = vperm.slane %v646, 4
        %v666 = vmul.f32 %v621, %v665
        %v667 = vmul.f32 %v622, %v665
        %v668 = vmul.f32 %v623, %v665
        %v669 = vadd.f32 %v662, %v666
        %v670 = vadd.f32 %v663, %v667
        %v671 = vadd.f32 %v664, %v668
        %v672 = vperm.slane %v646, 5
        %v673 = vmul.f32 %v643, %v672
        %v674 = vmul.f32 %v644, %v672
        %v675 = vmul.f32 %v645, %v672
        %v676 = vadd.f32 %v669, %v673
        %v677 = vadd.f32 %v670, %v674
        %v678 = vadd.f32 %v671, %v675
        %v679 = vperm.slane %v646, 6
        %v680 = vmul.f32 %v633, %v679
        %v681 = vmul.f32 %v634, %v679
        %v682 = vmul.f32 %v635, %v679
        %v683 = vperm.slane %v646, 7
        %v684 = vmul.f32 %v621, %v683
        %v685 = vmul.f32 %v622, %v683
        %v686 = vmul.f32 %v623, %v683
        %v687 = vadd.f32 %v680, %v684
        %v688 = vadd.f32 %v681, %v685
        %v689 = vadd.f32 %v682, %v686
        %v690 = vperm.slane %v647, 0
        %v691 = vmul.f32 %v643, %v690
        %v692 = vmul.f32 %v644, %v690
        %v693 = vmul.f32 %v645, %v690
        %v694 = vadd.f32 %v687, %v691
        %v695 = vadd.f32 %v688, %v692
        %v696 = vadd.f32 %v689, %v693
        %v700 = vrot.slane %v676, 1
        %v701 = vrot.slane %v677, 1
        %v702 = vsel %vm537, %v700, %v701
        %v703 = vrot.slane %v678, 1
        %v704 = vsel %vm537, %v701, %v703
        %v707 = vadd.f32 %v659, %v702
        %v708 = vadd.f32 %v660, %v704
        %v712 = vrot.slane %v694, 2
        %v713 = vrot.slane %v695, 2
        %v714 = vsel %vm550, %v712, %v713
        %v715 = vrot.slane %v696, 2
        %v716 = vsel %vm550, %v713, %v715
        %v719 = vadd.f32 %v707, %v714
        %v720 = vadd.f32 %v708, %v716
        %v721 = vpack.c.bf16 %v720, %v719
        %v722 = vld [vmem:[#allocation12] sm:$0xf]
        %v723 = vld [vmem:[#allocation12 + $0x4] sm:$0xf]
        %v724 = vld [vmem:[#allocation12 + $0x8] sm:$0xf]
        %v725 = vld [vmem:[#allocation12 + $0xc] sm:$0xf]
        %v726 = vld [vmem:[#allocation12 + $0x10] sm:$0xf]
        %v727 = vld [vmem:[#allocation12 + $0x14] sm:$0xf]
        %v728 = vld [vmem:[#allocation12 + $0x18] sm:$0xf]
        %v729 = vld [vmem:[#allocation12 + $0x1c] sm:$0xf]
        %v730 = vld [vmem:[#allocation12 + $0x20] sm:$0xf]
        %v731 = vld [vmem:[#allocation12 + $0x24] sm:$0xf]
        %v732 = vld [vmem:[#allocation12 + $0x28] sm:$0xf]
        %v733 = vld [vmem:[#allocation12 + $0x2c] sm:$0xf]
        %v734 = vld [vmem:[#allocation12 + $0x30] sm:$0xf]
        %v735 = vld [vmem:[#allocation12 + $0x34] sm:$0xf]
        %v736 = vld [vmem:[#allocation12 + $0x38] sm:$0xf]
        %v737 = vld [vmem:[#allocation12 + $0x3c] sm:$0xf]
        %v738 = vld [vmem:[%s6] sm:$0x1]
        %v740 = vperm.slane %v738, 0
        %v758 = vunpack.c.l.b16 %v722
        %v759 = vunpack.c.l.b16 %v723
        %v760 = vunpack.c.l.b16 %v724
        %v761 = vunpack.c.l.b16 %v725
        %v762 = vunpack.c.l.b16 %v726
        %v763 = vunpack.c.l.b16 %v727
        %v764 = vunpack.c.l.b16 %v728
        %v765 = vunpack.c.l.b16 %v729
        %v766 = vunpack.c.l.b16 %v730
        %v767 = vunpack.c.l.b16 %v731
        %v768 = vunpack.c.l.b16 %v732
        %v769 = vunpack.c.l.b16 %v733
        %v770 = vunpack.c.l.b16 %v734
        %v771 = vunpack.c.l.b16 %v735
        %v772 = vunpack.c.l.b16 %v736
        %v773 = vunpack.c.l.b16 %v737
        %v774 = vpack.c.b16 %v759, %v758
        %v775 = vpack.c.b16 %v761, %v760
        %v776 = vpack.c.b16 %v763, %v762
        %v777 = vpack.c.b16 %v765, %v764
        %v778 = vpack.c.b16 %v767, %v766
        %v779 = vpack.c.b16 %v769, %v768
        %v780 = vpack.c.b16 %v771, %v770
        %v781 = vpack.c.b16 %v773, %v772
        %790 = vmatpush.bf16.msra.mxu0 %v781
        %791 = vmatpush.bf16.msra.mxu0 %v780
        %792 = vmatpush.bf16.msra.mxu0 %v779
        %793 = vmatpush.bf16.msra.mxu0 %v778
        %794 = vmatpush.bf16.msra.mxu0 %v777
        %795 = vmatpush.bf16.msra.mxu0 %v776
        %796 = vmatpush.bf16.msra.mxu0 %v775
        %797 = vmatpush.bf16.msra.mxu0 %v774
        %798 = vmatmul.bf16.gmra.mxu0 %v721
        %v799 = vpop.f32.mrf.mxu0
        %v800 = vadd.f32 %v740, %v799
        %v801 = vpop.f32.mrf.mxu0
        %v802 = vadd.f32 %v740, %v801
        %803 = vdwg.mxu0
        %v804 = vmax.f32 %v800, 0.0
        %v805 = vmax.f32 %v802, 0.0
        %806 = vst [vmem:[%s364] sm:$0xff] %v804
        %807 = vst [vmem:[%s364 + $0x8] sm:$0xff] %v805
        %s808 = sand.u32 %s186, 1
        %s809 = scalar_lea.sflag [#allocation6], %s808
        %s810 = sand.u32 %s186, 1
        %s811 = smul.addr %s810, 16
        %s812 = scalar_lea.vmem [#allocation13], %s811
        // Predicated region
        $region69: #{tpu_custom_call.1} parent=47 // pred_check
          %p813 = pneg %p196
        $region70: #{tpu_custom_call.1} parent=47 // pred_check_branch
          %815 = sbr.rel (%p813) target = $region72
        $region71: #{tpu_custom_call.1} parent=47 // pred_region
          %817 = vsyncadd %s809, 0
          %s818 = smul.addr %s26, 2
          %s819 = smul.addr %s818, 8
          %s820 = scalar_lea.hbm %s7, %s819
          %s821 = sshll.u32 %s812, 4
          %s822 = int_to_ptr.vmem [resolvable:$true] %s821
          %s823 = sshll.u32 %s820, 4
          %s824 = int_to_ptr.hbm [resolvable:$true] %s823
          %829 = dma.vmem_to_hbm [thread:$0]  %s822, 256, %s824, %s809, 128, 128, 8
        $region72: #{tpu_custom_call.1} parent=47 // pred_fallthru
          _
      $region48: #{tpu_custom_call.1} parent=5 // pred_fallthru
        _
      %p830 = scmp.le.s32.totalorder 2, %s21
      // Predicated region
      $region73: #{tpu_custom_call.1} parent=5 // pred_check
        %p831 = pneg %p830
      $region74: #{tpu_custom_call.1} parent=5 // pred_check_branch
        %833 = sbr.rel (%p831) target = $region76
      $region75: #{tpu_custom_call.1} parent=5 // pred_region
        %s834 = ssub.s32 %s21, 2
        // Predicated region
        $region77: #{tpu_custom_call.1} parent=75 // pred_check
          %p835 = pneg %p202
        $region78: #{tpu_custom_call.1} parent=75 // pred_check_branch
          %837 = sbr.rel (%p835) target = $region80
        $region79: #{tpu_custom_call.1} parent=75 // pred_region
          %s838 = sand.u32 %s187, 1
          %s839 = scalar_lea.sflag [#allocation6], %s838
          %s840 = sand.u32 %s187, 1
          %s841 = smul.addr %s840, 16
          %s842 = scalar_lea.vmem [#allocation13], %s841
          %844 = dma.done %s839, 256
        $region80: #{tpu_custom_call.1} parent=75 // pred_fallthru
          _
      $region76: #{tpu_custom_call.1} parent=5 // pred_fallthru
        _
    $region6: #{tpu_custom_call.1} parent=1 // loop_footer
      %s25 = sadd.s32 1, %s21
    $region7: #{tpu_custom_call.1} parent=1 // loop_footer_branch
      %20 = sbr.rel target = $region3
    $region8: #{tpu_custom_call.1} parent=1 // loop_exit
      _
    %845 = vsyncpa [#allocation5], 1
    %s846 = scalar_lea.sflag [#allocation5], 1
    %847 = vsyncpa %s846, 1
    %848 = vsyncpa [#allocation8], 1
    %849 = vsyncpa [#allocation11], 1
    %850 = vsyncpa [#allocation6], 1
    %s851 = scalar_lea.sflag [#allocation6], 1
    %852 = vsyncpa %s851, 1

</llo_original>
